<compile_context>
chip_gen: v5e
topology: v5e:2x2
jax: 0.10.0
libtpu: 0.0.40
codegen_flags: <defaults>
</compile_context>

<pallas_src>
import jax
import jax.numpy as jnp
from jax.experimental import pallas as pl
from jax.experimental.pallas import tpu as pltpu

# Module hyper-parameters (ImprovedDiceFocalLoss.__init__ defaults).
NUM_CLASSES = 3
GAMMA = 3.0                  # integer-valued -> cubed explicitly in-kernel
SMOOTH = 1e-6
DICE_WEIGHT = 0.8
FOCAL_WEIGHT = 0.2
ALPHA = (0.005, 25.0, 30.0)  # compile-time constants inside the kernel

LANE = 128                   # pixels per vreg row (lane axis)
TILE_R_CAP = 1024            # sublane rows per grid step (131072 px/step)
CORE_SPLIT = 2               # row-tile split -> work for both v7x TensorCores

# Fused lane-dense accumulator layout (one (OUT_ROWS, 128) block per
# (sample, split)): row 0 = focal partials, then C rows each of inter / psum /
# tsum partials; remaining rows are zero padding for (8,128) alignment.
ROW_FOCAL = 0
ROW_INTER = 1
ROW_PSUM = 1 + NUM_CLASSES
ROW_TSUM = 1 + 2 * NUM_CLASSES
OUT_ROWS = 16
assert OUT_ROWS >= 1 + 3 * NUM_CLASSES


def _cdiv(a, b):
    return -(-a // b)


def _pick_tiling(r, cap):
    """Choose (tile_r, core_split, inner_j, r_pad) for r sublane rows/sample."""
    if r <= cap:
        return r, 1, 1, r                       # single tile: block == full dim
    slack = cap + cap // 2                      # float above the cap to land on
    best = 0                                    # an exact divisor (no row pad)
    for cand in range(8, slack + 1, 8):
        nt = r // cand
        if nt and cand * nt == r and nt % CORE_SPLIT == 0:
            best = cand
    if best:
        total = r // best
        return best, CORE_SPLIT, total // CORE_SPLIT, r
    # Fallback: round the tile count up to a multiple of CORE_SPLIT with
    # tile_r a multiple of 8; the small row padding uses the sentinel scheme.
    total = max(_cdiv(r, cap), CORE_SPLIT)
    total = _cdiv(total, CORE_SPLIT) * CORE_SPLIT
    tile_r = _cdiv(_cdiv(r, total), 8) * 8
    return tile_r, CORE_SPLIT, total // CORE_SPLIT, tile_r * total


def _loss_kernel(x_ref, t_ref, out_ref):
    """One (sample i, core-split s, row-tile j) grid step.

    x_ref:   (1, C, TILE_R, LANE) logits, pixels dense on lanes
    t_ref:   (1, TILE_R, LANE)    integer labels (sentinel value C for padding)
    out_ref: (1, 1, OUT_ROWS, LANE) f32 fused lane-wise partial accumulators,
             resident across the last grid axis (init at j == 0).
    """
    jj = pl.program_id(2)
    n_cls = x_ref.shape[1]
    f32 = jnp.float32

    t = t_ref[0]                                           # (TILE_R, LANE) int

    # ---- running max over classes (re-read x from the VMEM block; no copies)
    m = x_ref[0, 0].astype(f32)
    for c in range(1, n_cls):
        m = jnp.maximum(m, x_ref[0, c].astype(f32))

    # ---- per-class exp; accumulate softmax denom + target-class stats -------
    sez = None
    z_t = jnp.zeros_like(m)
    e_t = jnp.zeros_like(m)
    alpha_t = jnp.zeros_like(m)
    es = []
    tsum_rows = []
    for c in range(n_cls):
        is_c = t == c                                      # sentinel -> never
        z_c = x_ref[0, c].astype(f32) - m
        e_c = jnp.exp(z_c)                                 # EUP
        es.append(e_c)
        sez = e_c if sez is None else sez + e_c
        z_t = jnp.where(is_c, z_c, z_t)
        e_t = jnp.where(is_c, e_c, e_t)
        alpha_t = jnp.where(is_c, ALPHA[c], alpha_t)
        tsum_rows.append(jnp.sum(is_c.astype(f32), axis=0, keepdims=True))
    # m dead here; live slabs: t, sez, z_t, e_t, alpha_t, es[0..C-1]

    # ---- softmax normalization (EUP) + focal term ----------------------------
    inv = pl.reciprocal(sez, approx=True)
    inv = inv * (2.0 - sez * inv)              # one Newton step -> ~f32 accurate
    ce = jnp.log(sez) - z_t                    # -log softmax(target)
    p_t = e_t * inv                            # target-class probability
    omp = 1.0 - p_t
    focal = alpha_t * (omp * omp * omp) * ce   # gamma == 3 baked in
    focal_row = jnp.sum(focal, axis=0, keepdims=True)               # (1, LANE)

    # ---- dice partials (lane-dense rows) -------------------------------------
    inter_rows = []
    psum_rows = []
    for c in range(n_cls):
        prob_c = es[c] * inv
        psum_rows.append(jnp.sum(prob_c, axis=0, keepdims=True))
        inter_rows.append(
            jnp.sum(jnp.where(t == c, prob_c, 0.0), axis=0, keepdims=True))

    pad_rows = OUT_ROWS - (1 + 3 * n_cls)
    part = jnp.concatenate(
        [focal_row] + inter_rows + psum_rows + tsum_rows
        + [jnp.zeros((pad_rows, LANE), f32)], axis=0)       # (OUT_ROWS, LANE)

    @pl.when(jj == 0)
    def _init():
        out_ref[0, 0] = part

    @pl.when(jj > 0)
    def _accumulate():
        out_ref[0, 0] += part


def improved_dice_focal_loss(logits_nchw, targets_nhw, *, tile_r_cap=TILE_R_CAP):
    """Pallas implementation of ImprovedDiceFocalLoss.forward.

    logits_nchw: (N, C, H, W) float logits (f32 or bf16)
    targets_nhw: (N, H, W)    integer class labels in [0, C)
    returns: scalar f32 loss
    """
    n, nc, h, w = logits_nchw.shape
    assert nc == NUM_CLASSES == len(ALPHA)
    hw = h * w

    # Channels-first all the way: only free reshapes.
    x = logits_nchw.reshape(n, nc, hw)
    t = targets_nhw.reshape(n, hw)
    if not jnp.issubdtype(t.dtype, jnp.integer):
        t = t.astype(jnp.int32)

    r = _cdiv(hw, LANE)
    tile_r, core_split, inner_j, r_pad = _pick_tiling(r, tile_r_cap)
    hw_pad = r_pad * LANE
    if hw_pad != hw:
        # Sentinel padding: targets get an out-of-range class (== nc), logits
        # get zeros.  Padded pixels contribute exactly 0 to focal/inter/tsum
        # and exactly 1/nc per class to psum (corrected in the epilogue), so
        # no per-pixel mask math is needed inside the kernel.
        x = jnp.pad(x, ((0, 0), (0, 0), (0, hw_pad - hw)))
        t = jnp.pad(t, ((0, 0), (0, hw_pad - hw)), constant_values=nc)
    x = x.reshape(n, nc, r_pad, LANE)
    t = t.reshape(n, r_pad, LANE)

    out = pl.pallas_call(
        _loss_kernel,
        out_shape=jax.ShapeDtypeStruct((n, core_split, OUT_ROWS, LANE),
                                       jnp.float32),
        grid_spec=pltpu.PrefetchScalarGridSpec(
            num_scalar_prefetch=0,
            grid=(n, core_split, inner_j),
            in_specs=[
                pl.BlockSpec((1, nc, tile_r, LANE),
                             lambda i, s, j: (i, 0, s * inner_j + j, 0)),
                pl.BlockSpec((1, tile_r, LANE),
                             lambda i, s, j: (i, s * inner_j + j, 0)),
            ],
            out_specs=pl.BlockSpec((1, 1, OUT_ROWS, LANE),
                                   lambda i, s, j: (i, s, 0, 0)),
        ),
        compiler_params=pltpu.CompilerParams(
            dimension_semantics=("parallel", "parallel", "arbitrary")),
    )(x, t)

    # ---- tiny scalar epilogue -------------------------------------------------
    acc = jnp.sum(out, axis=(0, 1))                         # (OUT_ROWS, LANE)
    alpha_vec = jnp.array(ALPHA, dtype=jnp.float32)

    # focal: mean over all N*H*W real pixels (padded pixels contribute 0)
    focal_mean = jnp.sum(acc[ROW_FOCAL]) / (n * hw)

    # dice: per-class sums over all samples/pixels, then weighted class mean
    inter = jnp.sum(acc[ROW_INTER:ROW_INTER + nc], axis=-1)
    psum = jnp.sum(acc[ROW_PSUM:ROW_PSUM + nc], axis=-1)
    tsum = jnp.sum(acc[ROW_TSUM:ROW_TSUM + nc], axis=-1)
    num_pad = n * (hw_pad - hw)
    if num_pad:
        psum = psum - num_pad / nc         # exact closed-form pad correction
    union = psum + tsum
    dice = (2.0 * inter + SMOOTH) / (union + SMOOTH)
    dice_loss_c = jnp.where(union > 0, 1.0 - dice, 0.0)
    dice_mean = jnp.mean(alpha_vec * dice_loss_c)

    return FOCAL_WEIGHT * focal_mean + DICE_WEIGHT * dice_mean


def _reference_loss(logits_nchw, targets_nhw):
    """Plain-JAX reference mirroring the PyTorch module, for verification."""
    alpha = jnp.array(ALPHA, dtype=jnp.float32)
    x = logits_nchw.astype(jnp.float32)
    t = targets_nhw.astype(jnp.int32)

    logp = jax.nn.log_softmax(x, axis=1)                     # (N,C,H,W)
    one_hot = jax.nn.one_hot(t, NUM_CLASSES, axis=1)         # (N,C,H,W)
    ce = -jnp.sum(one_hot * logp, axis=1)                    # (N,H,W)
    pt = jnp.exp(-ce)
    focal = alpha[t] * ((1.0 - pt) ** GAMMA) * ce
    focal_mean = jnp.mean(focal)

    probs = jax.nn.softmax(x, axis=1)
    inter = jnp.sum(probs * one_hot, axis=(0, 2, 3))
    union = jnp.sum(probs, axis=(0, 2, 3)) + jnp.sum(one_hot, axis=(0, 2, 3))
    dice = (2.0 * inter + SMOOTH) / (union + SMOOTH)
    dice_loss_c = jnp.where(union > 0, 1.0 - dice, 0.0)
    dice_mean = jnp.mean(alpha * dice_loss_c)

    return FOCAL_WEIGHT * focal_mean + DICE_WEIGHT * dice_mean


if __name__ == "__main__":
    key = jax.random.PRNGKey(0)

    def _check(n, h, w, k, **kw):
        k1, k2 = jax.random.split(k)
        logits = jax.random.normal(k1, (n, NUM_CLASSES, h, w), dtype=jnp.float32)
        targets = jax.random.randint(k2, (n, h, w), 0, NUM_CLASSES,
                                     dtype=jnp.int32)
        loss = jax.block_until_ready(improved_dice_focal_loss(logits, targets, **kw))
        ref = jax.block_until_ready(_reference_loss(logits, targets))
        assert jnp.isfinite(loss), "non-finite loss"
        assert jnp.allclose(loss, ref, rtol=1e-4, atol=1e-5), (n, h, w, loss, ref)

    k0, k1, k2 = jax.random.split(key, 3)
    _check(2, 16, 16, k0)                     # lane-aligned, single-tile path
    _check(2, 20, 20, k1)                     # ragged H*W -> sentinel-pad path
    _check(2, 64, 64, k2, tile_r_cap=8)       # forced multi-tile + core-split path

    print("KERNEL_OK")
</pallas_src>

<mosaic_0001>
module attributes {stable_mosaic.version = 11 : i64} {
  func.func @_loss_kernel(%arg0: i32, %arg1: i32, %arg2: i32, %arg3: memref<1x3x2x128xf32, #tpu.memory_space<vmem>>, %arg4: memref<1x2x128xi32, #tpu.memory_space<vmem>>, %arg5: memref<1x1x16x128xf32, #tpu.memory_space<vmem>>) attributes {dimension_semantics = [#tpu.dimension_semantics<parallel>, #tpu.dimension_semantics<parallel>, #tpu.dimension_semantics<arbitrary>], iteration_bounds = array<i64: 2, 1, 1>, scalar_prefetch = 0 : i64, scratch_operands = 0 : i64, tpu.core_type = #tpu.core_type<tc>, window_params = [{transform_indices = @transform_0, window_bounds = array<i64: 1, 3, 2, 128>}, {transform_indices = @transform_1, window_bounds = array<i64: 1, 2, 128>}, {transform_indices = @transform_2, window_bounds = array<i64: 1, 1, 16, 128>}]} {
    %c0 = arith.constant 0 : index
    %c0_0 = arith.constant 0 : index
    %c0_1 = arith.constant 0 : index
    %0 = vector.load %arg4[%c0, %c0_0, %c0_1] : memref<1x2x128xi32, #tpu.memory_space<vmem>>, vector<1x2x128xi32>
    %1 = vector.shape_cast %0 : vector<1x2x128xi32> to vector<2x128xi32>
    %c0_2 = arith.constant 0 : index
    %c0_3 = arith.constant 0 : index
    %c0_4 = arith.constant 0 : index
    %c0_5 = arith.constant 0 : index
    %2 = vector.load %arg3[%c0_2, %c0_3, %c0_4, %c0_5] : memref<1x3x2x128xf32, #tpu.memory_space<vmem>>, vector<1x1x2x128xf32>
    %3 = vector.shape_cast %2 : vector<1x1x2x128xf32> to vector<2x128xf32>
    %c0_6 = arith.constant 0 : index
    %c1 = arith.constant 1 : index
    %c0_7 = arith.constant 0 : index
    %c0_8 = arith.constant 0 : index
    %4 = vector.load %arg3[%c0_6, %c1, %c0_7, %c0_8] : memref<1x3x2x128xf32, #tpu.memory_space<vmem>>, vector<1x1x2x128xf32>
    %5 = vector.shape_cast %4 : vector<1x1x2x128xf32> to vector<2x128xf32>
    %6 = arith.maximumf %3, %5 : vector<2x128xf32>
    %c0_9 = arith.constant 0 : index
    %c2 = arith.constant 2 : index
    %c0_10 = arith.constant 0 : index
    %c0_11 = arith.constant 0 : index
    %7 = vector.load %arg3[%c0_9, %c2, %c0_10, %c0_11] : memref<1x3x2x128xf32, #tpu.memory_space<vmem>>, vector<1x1x2x128xf32>
    %8 = vector.shape_cast %7 : vector<1x1x2x128xf32> to vector<2x128xf32>
    %9 = arith.maximumf %6, %8 : vector<2x128xf32>
    %cst = arith.constant 0.000000e+00 : f32
    %10 = vector.broadcast %cst : f32 to vector<2x128xf32>
    %cst_12 = arith.constant 0.000000e+00 : f32
    %11 = vector.broadcast %cst_12 : f32 to vector<2x128xf32>
    %cst_13 = arith.constant 0.000000e+00 : f32
    %12 = vector.broadcast %cst_13 : f32 to vector<2x128xf32>
    %c0_i32 = arith.constant 0 : i32
    %13 = vector.broadcast %c0_i32 : i32 to vector<2x128xi32>
    %14 = arith.cmpi eq, %1, %13 : vector<2x128xi32>
    %c0_14 = arith.constant 0 : index
    %c0_15 = arith.constant 0 : index
    %c0_16 = arith.constant 0 : index
    %c0_17 = arith.constant 0 : index
    %15 = vector.load %arg3[%c0_14, %c0_15, %c0_16, %c0_17] : memref<1x3x2x128xf32, #tpu.memory_space<vmem>>, vector<1x1x2x128xf32>
    %16 = vector.shape_cast %15 : vector<1x1x2x128xf32> to vector<2x128xf32>
    %17 = arith.subf %16, %9 : vector<2x128xf32>
    %18 = math.exp %17 : vector<2x128xf32>
    %19 = arith.select %14, %17, %10 : vector<2x128xi1>, vector<2x128xf32>
    %20 = arith.select %14, %18, %11 : vector<2x128xi1>, vector<2x128xf32>
    %cst_18 = arith.constant 5.000000e-03 : f32
    %21 = vector.broadcast %cst_18 : f32 to vector<2x128xf32>
    %22 = arith.select %14, %21, %12 : vector<2x128xi1>, vector<2x128xf32>
    %23 = arith.extui %14 : vector<2x128xi1> to vector<2x128xi32>
    %24 = arith.sitofp %23 : vector<2x128xi32> to vector<2x128xf32>
    %cst_19 = arith.constant dense<0.000000e+00> : vector<128xf32>
    %25 = vector.multi_reduction <add>, %24, %cst_19 [0] : vector<2x128xf32> to vector<128xf32>
    %26 = vector.shape_cast %25 : vector<128xf32> to vector<1x128xf32>
    %c1_i32 = arith.constant 1 : i32
    %27 = vector.broadcast %c1_i32 : i32 to vector<2x128xi32>
    %28 = arith.cmpi eq, %1, %27 : vector<2x128xi32>
    %c0_20 = arith.constant 0 : index
    %c1_21 = arith.constant 1 : index
    %c0_22 = arith.constant 0 : index
    %c0_23 = arith.constant 0 : index
    %29 = vector.load %arg3[%c0_20, %c1_21, %c0_22, %c0_23] : memref<1x3x2x128xf32, #tpu.memory_space<vmem>>, vector<1x1x2x128xf32>
    %30 = vector.shape_cast %29 : vector<1x1x2x128xf32> to vector<2x128xf32>
    %31 = arith.subf %30, %9 : vector<2x128xf32>
    %32 = math.exp %31 : vector<2x128xf32>
    %33 = arith.addf %18, %32 : vector<2x128xf32>
    %34 = arith.select %28, %31, %19 : vector<2x128xi1>, vector<2x128xf32>
    %35 = arith.select %28, %32, %20 : vector<2x128xi1>, vector<2x128xf32>
    %cst_24 = arith.constant 2.500000e+01 : f32
    %36 = vector.broadcast %cst_24 : f32 to vector<2x128xf32>
    %37 = arith.select %28, %36, %22 : vector<2x128xi1>, vector<2x128xf32>
    %38 = arith.extui %28 : vector<2x128xi1> to vector<2x128xi32>
    %39 = arith.sitofp %38 : vector<2x128xi32> to vector<2x128xf32>
    %cst_25 = arith.constant dense<0.000000e+00> : vector<128xf32>
    %40 = vector.multi_reduction <add>, %39, %cst_25 [0] : vector<2x128xf32> to vector<128xf32>
    %41 = vector.shape_cast %40 : vector<128xf32> to vector<1x128xf32>
    %c2_i32 = arith.constant 2 : i32
    %42 = vector.broadcast %c2_i32 : i32 to vector<2x128xi32>
    %43 = arith.cmpi eq, %1, %42 : vector<2x128xi32>
    %c0_26 = arith.constant 0 : index
    %c2_27 = arith.constant 2 : index
    %c0_28 = arith.constant 0 : index
    %c0_29 = arith.constant 0 : index
    %44 = vector.load %arg3[%c0_26, %c2_27, %c0_28, %c0_29] : memref<1x3x2x128xf32, #tpu.memory_space<vmem>>, vector<1x1x2x128xf32>
    %45 = vector.shape_cast %44 : vector<1x1x2x128xf32> to vector<2x128xf32>
    %46 = arith.subf %45, %9 : vector<2x128xf32>
    %47 = math.exp %46 : vector<2x128xf32>
    %48 = arith.addf %33, %47 : vector<2x128xf32>
    %49 = arith.select %43, %46, %34 : vector<2x128xi1>, vector<2x128xf32>
    %50 = arith.select %43, %47, %35 : vector<2x128xi1>, vector<2x128xf32>
    %cst_30 = arith.constant 3.000000e+01 : f32
    %51 = vector.broadcast %cst_30 : f32 to vector<2x128xf32>
    %52 = arith.select %43, %51, %37 : vector<2x128xi1>, vector<2x128xf32>
    %53 = arith.extui %43 : vector<2x128xi1> to vector<2x128xi32>
    %54 = arith.sitofp %53 : vector<2x128xi32> to vector<2x128xf32>
    %cst_31 = arith.constant dense<0.000000e+00> : vector<128xf32>
    %55 = vector.multi_reduction <add>, %54, %cst_31 [0] : vector<2x128xf32> to vector<128xf32>
    %56 = vector.shape_cast %55 : vector<128xf32> to vector<1x128xf32>
    %57 = tpu.reciprocal %48 {approx = true} : vector<2x128xf32> -> vector<2x128xf32>
    %58 = arith.mulf %48, %57 : vector<2x128xf32>
    %cst_32 = arith.constant 2.000000e+00 : f32
    %59 = vector.broadcast %cst_32 : f32 to vector<2x128xf32>
    %60 = arith.subf %59, %58 : vector<2x128xf32>
    %61 = arith.mulf %57, %60 : vector<2x128xf32>
    %62 = math.log %48 : vector<2x128xf32>
    %63 = arith.subf %62, %49 : vector<2x128xf32>
    %64 = arith.mulf %50, %61 : vector<2x128xf32>
    %cst_33 = arith.constant 1.000000e+00 : f32
    %65 = vector.broadcast %cst_33 : f32 to vector<2x128xf32>
    %66 = arith.subf %65, %64 : vector<2x128xf32>
    %67 = arith.mulf %66, %66 : vector<2x128xf32>
    %68 = arith.mulf %67, %66 : vector<2x128xf32>
    %69 = arith.mulf %52, %68 : vector<2x128xf32>
    %70 = arith.mulf %69, %63 : vector<2x128xf32>
    %cst_34 = arith.constant dense<0.000000e+00> : vector<128xf32>
    %71 = vector.multi_reduction <add>, %70, %cst_34 [0] : vector<2x128xf32> to vector<128xf32>
    %72 = vector.shape_cast %71 : vector<128xf32> to vector<1x128xf32>
    %73 = arith.mulf %18, %61 : vector<2x128xf32>
    %cst_35 = arith.constant dense<0.000000e+00> : vector<128xf32>
    %74 = vector.multi_reduction <add>, %73, %cst_35 [0] : vector<2x128xf32> to vector<128xf32>
    %75 = vector.shape_cast %74 : vector<128xf32> to vector<1x128xf32>
    %c0_i32_36 = arith.constant 0 : i32
    %76 = vector.broadcast %c0_i32_36 : i32 to vector<2x128xi32>
    %77 = arith.cmpi eq, %1, %76 : vector<2x128xi32>
    %cst_37 = arith.constant 0.000000e+00 : f32
    %78 = vector.broadcast %cst_37 : f32 to vector<2x128xf32>
    %79 = arith.select %77, %73, %78 : vector<2x128xi1>, vector<2x128xf32>
    %cst_38 = arith.constant dense<0.000000e+00> : vector<128xf32>
    %80 = vector.multi_reduction <add>, %79, %cst_38 [0] : vector<2x128xf32> to vector<128xf32>
    %81 = vector.shape_cast %80 : vector<128xf32> to vector<1x128xf32>
    %82 = arith.mulf %32, %61 : vector<2x128xf32>
    %cst_39 = arith.constant dense<0.000000e+00> : vector<128xf32>
    %83 = vector.multi_reduction <add>, %82, %cst_39 [0] : vector<2x128xf32> to vector<128xf32>
    %84 = vector.shape_cast %83 : vector<128xf32> to vector<1x128xf32>
    %c1_i32_40 = arith.constant 1 : i32
    %85 = vector.broadcast %c1_i32_40 : i32 to vector<2x128xi32>
    %86 = arith.cmpi eq, %1, %85 : vector<2x128xi32>
    %cst_41 = arith.constant 0.000000e+00 : f32
    %87 = vector.broadcast %cst_41 : f32 to vector<2x128xf32>
    %88 = arith.select %86, %82, %87 : vector<2x128xi1>, vector<2x128xf32>
    %cst_42 = arith.constant dense<0.000000e+00> : vector<128xf32>
    %89 = vector.multi_reduction <add>, %88, %cst_42 [0] : vector<2x128xf32> to vector<128xf32>
    %90 = vector.shape_cast %89 : vector<128xf32> to vector<1x128xf32>
    %91 = arith.mulf %47, %61 : vector<2x128xf32>
    %cst_43 = arith.constant dense<0.000000e+00> : vector<128xf32>
    %92 = vector.multi_reduction <add>, %91, %cst_43 [0] : vector<2x128xf32> to vector<128xf32>
    %93 = vector.shape_cast %92 : vector<128xf32> to vector<1x128xf32>
    %c2_i32_44 = arith.constant 2 : i32
    %94 = vector.broadcast %c2_i32_44 : i32 to vector<2x128xi32>
    %95 = arith.cmpi eq, %1, %94 : vector<2x128xi32>
    %cst_45 = arith.constant 0.000000e+00 : f32
    %96 = vector.broadcast %cst_45 : f32 to vector<2x128xf32>
    %97 = arith.select %95, %91, %96 : vector<2x128xi1>, vector<2x128xf32>
    %cst_46 = arith.constant dense<0.000000e+00> : vector<128xf32>
    %98 = vector.multi_reduction <add>, %97, %cst_46 [0] : vector<2x128xf32> to vector<128xf32>
    %99 = vector.shape_cast %98 : vector<128xf32> to vector<1x128xf32>
    %cst_47 = arith.constant 0.000000e+00 : f32
    %100 = vector.broadcast %cst_47 : f32 to vector<6x128xf32>
    %101 = tpu.concatenate %72, %81, %90, %99, %75, %84, %93, %26, %41, %56, %100 in 0 : vector<1x128xf32>, vector<1x128xf32>, vector<1x128xf32>, vector<1x128xf32>, vector<1x128xf32>, vector<1x128xf32>, vector<1x128xf32>, vector<1x128xf32>, vector<1x128xf32>, vector<1x128xf32>, vector<6x128xf32> -> vector<16x128xf32>
    %c0_i32_48 = arith.constant 0 : i32
    %102 = arith.cmpi eq, %arg2, %c0_i32_48 : i32
    %103 = arith.extui %102 : i1 to i32
    %c0_i32_49 = arith.constant 0 : i32
    %104 = arith.cmpi ne, %103, %c0_i32_49 : i32
    scf.if %104 {
      %c0_52 = arith.constant 0 : index
      %c0_53 = arith.constant 0 : index
      %c0_54 = arith.constant 0 : index
      %c0_55 = arith.constant 0 : index
      %108 = vector.load %arg5[%c0_52, %c0_53, %c0_54, %c0_55] : memref<1x1x16x128xf32, #tpu.memory_space<vmem>>, vector<1x1x16x128xf32>
      %109 = vector.shape_cast %108 : vector<1x1x16x128xf32> to vector<16x128xf32>
      %110 = vector.shape_cast %101 : vector<16x128xf32> to vector<1x1x16x128xf32>
      tpu.vector_store %arg5[%c0_52, %c0_53, %c0_54, %c0_55], %110 {strides = array<i32>} : memref<1x1x16x128xf32, #tpu.memory_space<vmem>>, vector<1x1x16x128xf32>,
    } else {
    }
    %c0_i32_50 = arith.constant 0 : i32
    %105 = arith.cmpi sgt, %arg2, %c0_i32_50 : i32
    %106 = arith.extui %105 : i1 to i32
    %c0_i32_51 = arith.constant 0 : i32
    %107 = arith.cmpi ne, %106, %c0_i32_51 : i32
    scf.if %107 {
      %c0_52 = arith.constant 0 : index
      %c0_53 = arith.constant 0 : index
      %c0_54 = arith.constant 0 : index
      %c0_55 = arith.constant 0 : index
      %108 = vector.load %arg5[%c0_52, %c0_53, %c0_54, %c0_55] : memref<1x1x16x128xf32, #tpu.memory_space<vmem>>, vector<1x1x16x128xf32>
      %109 = vector.shape_cast %108 : vector<1x1x16x128xf32> to vector<16x128xf32>
      %110 = arith.addf %109, %101 : vector<16x128xf32>
      %c0_56 = arith.constant 0 : index
      %c0_57 = arith.constant 0 : index
      %c0_58 = arith.constant 0 : index
      %c0_59 = arith.constant 0 : index
      %111 = vector.load %arg5[%c0_56, %c0_57, %c0_58, %c0_59] : memref<1x1x16x128xf32, #tpu.memory_space<vmem>>, vector<1x1x16x128xf32>
      %112 = vector.shape_cast %111 : vector<1x1x16x128xf32> to vector<16x128xf32>
      %113 = vector.shape_cast %110 : vector<16x128xf32> to vector<1x1x16x128xf32>
      tpu.vector_store %arg5[%c0_56, %c0_57, %c0_58, %c0_59], %113 {strides = array<i32>} : memref<1x1x16x128xf32, #tpu.memory_space<vmem>>, vector<1x1x16x128xf32>,
    } else {
    }
    return
  }
  func.func @transform_0(%arg0: i32, %arg1: i32, %arg2: i32) -> (i32, i32, i32, i32) {
    %c1_i32 = arith.constant 1 : i32
    %0 = arith.muli %arg1, %c1_i32 : i32
    %1 = arith.addi %0, %arg2 : i32
    %c0_i32 = arith.constant 0 : i32
    %c0_i32_0 = arith.constant 0 : i32
    %c0_i32_1 = arith.constant 0 : i32
    return %arg0, %c0_i32, %1, %c0_i32_0 : i32, i32, i32, i32
  }
  func.func @transform_1(%arg0: i32, %arg1: i32, %arg2: i32) -> (i32, i32, i32) {
    %c1_i32 = arith.constant 1 : i32
    %0 = arith.muli %arg1, %c1_i32 : i32
    %1 = arith.addi %0, %arg2 : i32
    %c0_i32 = arith.constant 0 : i32
    %c0_i32_0 = arith.constant 0 : i32
    return %arg0, %1, %c0_i32 : i32, i32, i32
  }
  func.func @transform_2(%arg0: i32, %arg1: i32, %arg2: i32) -> (i32, i32, i32, i32) {
    %c0_i32 = arith.constant 0 : i32
    %c0_i32_0 = arith.constant 0 : i32
    %c0_i32_1 = arith.constant 0 : i32
    return %arg0, %arg1, %c0_i32, %c0_i32_0 : i32, i32, i32, i32
  }
}

</mosaic_0001>

<llo_original>
// kernel: tpu_custom_call.1
$region0: #{tpu_custom_call.1}
  #allocation0 [shape = 'u32[]', space=smem, size = 0x4, offset = 0x4, fixed_abs, tag = 'smem constant byte address 0x4 - core index']
  #allocation1 [shape = 'u32[72,128]{1,0:T(1,128)}', space=vmem, size = 0x9000, scoped, tag = 'internal scratch']
  %s0 = inlined_call_operand.hbm [shape: f32[2,3,2,128], index: 0, kind: input, shape index: {}]
  %s1 = inlined_call_operand.hbm [shape: s32[2,2,128], index: 1, kind: input, shape index: {}]
  %s2 = inlined_call_operand.hbm [shape: f32[2,1,16,128], index: 2, kind: output, shape index: {}]
  %s3 = sld [smem:[#allocation0]]
  $region57: #{tpu_custom_call.1} parent=0
    _
  %s5 = ssub.s32 1, %s3
  %s6 = scalar_select 0, %s5, %s3
  $region1: #{tpu_custom_call.1} parent=0
    #allocation2 [shape = 'u8[6144]{0}', space=vmem, size = 0x1800, scoped, tag = 'input window, operand 0']
    #allocation3 [shape = 's32[2]{0}', space=sflag, size = 0x8, scoped, tag = 'scoped memory for tpu_custom_call.1']
    #allocation4 [shape = 's32[2]{0}', space=sflag, size = 0x8, scoped, tag = 'scoped memory for tpu_custom_call.1']
    #allocation5 [shape = 'u8[2048]{0}', space=vmem, size = 0x800, scoped, tag = 'input window, operand 1']
    #allocation6 [shape = 's32[2]{0}', space=sflag, size = 0x8, scoped, tag = 'scoped memory for tpu_custom_call.1']
    #allocation7 [shape = 'u8[16384]{0}', space=vmem, size = 0x4000, scoped, tag = 'output window, operand 0']
    %7 = vsyncpa [#allocation3], 0
    %s8 = scalar_lea.sflag [#allocation3], 1
    %9 = vsyncpa %s8, 0
    %10 = vsyncpa [#allocation6], 0
    %s11 = scalar_lea.sflag [#allocation6], 1
    %12 = vsyncpa %s11, 0
    %13 = vsyncpa [#allocation4], 0
    %s14 = scalar_lea.sflag [#allocation4], 1
    %15 = vsyncpa %s14, 0
    loop: start=0, step=1, limit=4
    $region2: #{tpu_custom_call.1} parent=1 // loop_pre_header
      _
    $region3: #{tpu_custom_call.1} parent=1 // loop_header
      %s17 = sphi 0, %s21
      %p18 = scmp.ge.s32.totalorder %s17, 4
      %s24 = sphi 0, %s43
      %s25 = sphi 0, %s39
      %s26 = sphi 0, %s35
      %s27 = sphi 0, %s24
      %s28 = sphi 0, %s25
      %s29 = sphi 0, %s26
      %s30 = sphi 0, %s27
      %s31 = sphi 0, %s28
      %s32 = sphi 0, %s29
      %s50 = sphi 0, %s52
      %s53 = sphi 0, %s50
      %s54 = sphi 0, %s53
      %s70 = sphi 0, %s54
      %s80 = sphi 0, %s82
      %s83 = sphi 0, %s80
      %s84 = sphi 0, %s83
      %s100 = sphi 0, %s84
      %s108 = sphi 0, %s110
      %s111 = sphi 0, %s108
      %s112 = sphi 0, %s111
      %s128 = sphi 0, %s112
    $region4: #{tpu_custom_call.1} parent=1 // loop_header_branch
      %20 = sbr.rel (%p18) target = $region8
    $region5: #{tpu_custom_call.1} parent=1 // loop_body
      %s22 = ssub.s32 %s17, 1
      %s23 = ssub.s32 %s17, 2
      %s33 = sadd.s32 1, %s26
      %p34 = scmp.ge.s32.totalorder %s33, 1
      %s35 = scalar_select %p34, 0, %s33
      %s36 = sadd.s32 1, %s25
      %s37 = scalar_select %p34, %s36, %s25
      %p38 = scmp.ge.s32.totalorder %s37, 1
      %s39 = scalar_select %p38, 0, %s37
      %s40 = sadd.s32 1, %s24
      %s41 = scalar_select %p38, %s40, %s24
      %p42 = scmp.ge.s32.totalorder %s41, 2
      %s43 = scalar_select %p42, 0, %s41
      %s44 = sadd.s32 %s25, %s26
      %s45 = sadd.s32 %s39, %s35
      %s46 = ssub.s32 %s24, %s43
      %s47 = ssub.s32 %s44, %s45
      %s48 = sor.u32 %s46, %s47
      %p49 = scmp.eq.s32.totalorder %s48, 0
      %s51 = sadd.s32 %s50, 1
      %s52 = scalar_select %p49, %s50, %s51
      %p55 = pneg %p49
      %p56 = scmp.eq.s32.totalorder %s17, 1
      %p57 = por %p55, %p56
      %p58 = scmp.ne.s32.totalorder %s50, %s53
      %p59 = scmp.eq.s32.totalorder %s17, 0
      %p60 = por %p58, %p59
      %p61 = scmp.ne.s32.totalorder %s50, %s53
      %p62 = scmp.eq.s32.totalorder %s22, 1
      %p63 = por %p61, %p62
      %p64 = scmp.ne.s32.totalorder %s53, %s54
      %p65 = scmp.eq.s32.totalorder %s22, 0
      %p66 = por %p64, %p65
      %p67 = scmp.ne.s32.totalorder %s53, %s54
      %p68 = scmp.eq.s32.totalorder %s23, 1
      %p69 = por %p67, %p68
      %p71 = scmp.ne.s32.totalorder %s54, %s70
      %p72 = scmp.eq.s32.totalorder %s23, 0
      %p73 = por %p71, %p72
      %s74 = sadd.s32 %s25, %s26
      %s75 = sadd.s32 %s39, %s35
      %s76 = ssub.s32 %s24, %s43
      %s77 = ssub.s32 %s74, %s75
      %s78 = sor.u32 %s76, %s77
      %p79 = scmp.eq.s32.totalorder %s78, 0
      %s81 = sadd.s32 %s80, 1
      %s82 = scalar_select %p79, %s80, %s81
      %p85 = pneg %p79
      %p86 = scmp.eq.s32.totalorder %s17, 1
      %p87 = por %p85, %p86
      %p88 = scmp.ne.s32.totalorder %s80, %s83
      %p89 = scmp.eq.s32.totalorder %s17, 0
      %p90 = por %p88, %p89
      %p91 = scmp.ne.s32.totalorder %s80, %s83
      %p92 = scmp.eq.s32.totalorder %s22, 1
      %p93 = por %p91, %p92
      %p94 = scmp.ne.s32.totalorder %s83, %s84
      %p95 = scmp.eq.s32.totalorder %s22, 0
      %p96 = por %p94, %p95
      %p97 = scmp.ne.s32.totalorder %s83, %s84
      %p98 = scmp.eq.s32.totalorder %s23, 1
      %p99 = por %p97, %p98
      %p101 = scmp.ne.s32.totalorder %s84, %s100
      %p102 = scmp.eq.s32.totalorder %s23, 0
      %p103 = por %p101, %p102
      %s104 = ssub.s32 %s24, %s43
      %s105 = ssub.s32 %s25, %s39
      %s106 = sor.u32 %s104, %s105
      %p107 = scmp.eq.s32.totalorder %s106, 0
      %s109 = sadd.s32 %s108, 1
      %s110 = scalar_select %p107, %s108, %s109
      %p113 = pneg %p107
      %p114 = scmp.eq.s32.totalorder %s17, 1
      %p115 = por %p113, %p114
      %p116 = scmp.ne.s32.totalorder %s108, %s111
      %p117 = scmp.eq.s32.totalorder %s17, 0
      %p118 = por %p116, %p117
      %p119 = scmp.ne.s32.totalorder %s108, %s111
      %p120 = scmp.eq.s32.totalorder %s22, 1
      %p121 = por %p119, %p120
      %p122 = scmp.ne.s32.totalorder %s111, %s112
      %p123 = scmp.eq.s32.totalorder %s22, 0
      %p124 = por %p122, %p123
      %p125 = scmp.ne.s32.totalorder %s111, %s112
      %p126 = scmp.eq.s32.totalorder %s23, 1
      %p127 = por %p125, %p126
      %p129 = scmp.ne.s32.totalorder %s112, %s128
      %p130 = scmp.eq.s32.totalorder %s23, 0
      %p131 = por %p129, %p130
      %p132 = scmp.le.s32.totalorder 1, %s17
      %p133 = scmp.lt.s32.totalorder %s17, 3
      %p134 = pnand %p132, %p133
      %p135 = pneg %p134
      // Predicated region
      $region9: #{tpu_custom_call.1} parent=5 // pred_check
        _
      $region10: #{tpu_custom_call.1} parent=5 // pred_check_branch
        %137 = sbr.rel (%p134) target = $region12
      $region11: #{tpu_custom_call.1} parent=5 // pred_region
        %s138 = ssub.s32 %s17, 1
      $region12: #{tpu_custom_call.1} parent=5 // pred_fallthru
        _
      %p139 = scmp.lt.s32.totalorder %s17, 2
      // Predicated region
      $region13: #{tpu_custom_call.1} parent=5 // pred_check
        %p140 = pneg %p139
      $region14: #{tpu_custom_call.1} parent=5 // pred_check_branch
        %142 = sbr.rel (%p140) target = $region16
      $region15: #{tpu_custom_call.1} parent=5 // pred_region
        // Predicated region
        $region17: #{tpu_custom_call.1} parent=15 // pred_check
          %p143 = pneg %p60
        $region18: #{tpu_custom_call.1} parent=15 // pred_check_branch
          %145 = sbr.rel (%p143) target = $region20
        $region19: #{tpu_custom_call.1} parent=15 // pred_region
          %s146 = sand.u32 %s50, 1
          %s147 = scalar_lea.sflag [#allocation3], %s146
          %s148 = sand.u32 %s50, 1
          %s149 = smul.addr %s148, 6
          %s150 = scalar_lea.vmem [#allocation2], %s149
          %s151 = sadd.s32 %s25, %s26
          %153 = vsyncadd %s147, 0
          %s154 = smul.addr %s24, 3
          %s155 = sadd.s32 %s151, %s154
          %s156 = smul.addr %s155, 2
          %s157 = scalar_lea.hbm %s0, %s156
          %s158 = sshll.u32 %s157, 4
          %s159 = int_to_ptr.hbm [resolvable:$true] %s158
          %s160 = sshll.u32 %s150, 4
          %s161 = int_to_ptr.vmem [resolvable:$true] %s160
          %166 = dma.hbm_to_vmem [thread:$0]  %s159, 96, %s161, %s147, 32, 32, 2
        $region20: #{tpu_custom_call.1} parent=15 // pred_fallthru
          _
        // Predicated region
        $region21: #{tpu_custom_call.1} parent=15 // pred_check
          %p167 = pneg %p90
        $region22: #{tpu_custom_call.1} parent=15 // pred_check_branch
          %169 = sbr.rel (%p167) target = $region24
        $region23: #{tpu_custom_call.1} parent=15 // pred_region
          %s170 = sand.u32 %s80, 1
          %s171 = scalar_lea.sflag [#allocation6], %s170
          %s172 = sand.u32 %s80, 1
          %s173 = smul.addr %s172, 2
          %s174 = scalar_lea.vmem [#allocation5], %s173
          %s175 = sadd.s32 %s25, %s26
          %177 = vsyncadd %s171, 0
          %s178 = sadd.s32 %s175, %s24
          %s179 = smul.addr %s178, 2
          %s180 = scalar_lea.hbm %s1, %s179
          %s182 = sshll.u32 %s180, 4
          %s183 = int_to_ptr.hbm [resolvable:$true] %s182
          %s184 = sshll.u32 %s174, 4
          %s185 = int_to_ptr.vmem [resolvable:$true] %s184
          %187 = dma.hbm_to_vmem [thread:$0]  %s183, 32, %s185, %s171
        $region24: #{tpu_custom_call.1} parent=15 // pred_fallthru
          _
      $region16: #{tpu_custom_call.1} parent=5 // pred_fallthru
        _
      %p188 = scmp.le.s32.totalorder 1, %s17
      %p189 = scmp.lt.s32.totalorder %s17, 3
      %p190 = pnand %p188, %p189
      %p191 = pneg %p190
      // Predicated region
      $region25: #{tpu_custom_call.1} parent=5 // pred_check
        _
      $region26: #{tpu_custom_call.1} parent=5 // pred_check_branch
        %193 = sbr.rel (%p190) target = $region28
      $region27: #{tpu_custom_call.1} parent=5 // pred_region
        %s194 = ssub.s32 %s17, 1
        %s195 = sand.u32 %s53, 1
        %s196 = scalar_lea.sflag [#allocation3], %s195
        %s197 = sand.u32 %s53, 1
        %s198 = smul.addr %s197, 6
        %s199 = scalar_lea.vmem [#allocation2], %s198
        // Predicated region
        $region29: #{tpu_custom_call.1} parent=27 // pred_check
          %p200 = pneg %p66
        $region30: #{tpu_custom_call.1} parent=27 // pred_check_branch
          %202 = sbr.rel (%p200) target = $region32
        $region31: #{tpu_custom_call.1} parent=27 // pred_region
          %204 = dma.done %s196, 96
        $region32: #{tpu_custom_call.1} parent=27 // pred_fallthru
          _
        %s205 = sand.u32 %s83, 1
        %s206 = scalar_lea.sflag [#allocation6], %s205
        %s207 = sand.u32 %s83, 1
        %s208 = smul.addr %s207, 2
        %s209 = scalar_lea.vmem [#allocation5], %s208
        // Predicated region
        $region33: #{tpu_custom_call.1} parent=27 // pred_check
          %p210 = pneg %p96
        $region34: #{tpu_custom_call.1} parent=27 // pred_check_branch
          %212 = sbr.rel (%p210) target = $region36
        $region35: #{tpu_custom_call.1} parent=27 // pred_region
          %214 = dma.done %s206, 32
        $region36: #{tpu_custom_call.1} parent=27 // pred_fallthru
          _
        %s215 = sand.u32 %s53, 1
        %s216 = scalar_lea.sflag [#allocation3], %s215
        %s217 = sand.u32 %s53, 1
        %s218 = smul.addr %s217, 6
        %s219 = scalar_lea.vmem [#allocation2], %s218
        %p220 = pneg %p66
        %p221 = pneg %p63
        %s222 = sand.u32 %s83, 1
        %s223 = scalar_lea.sflag [#allocation6], %s222
        %s224 = sand.u32 %s83, 1
        %s225 = smul.addr %s224, 2
        %s226 = scalar_lea.vmem [#allocation5], %s225
        %p227 = pneg %p96
        %p228 = pneg %p93
        %p229 = pneg %p124
        %p230 = pneg %p121
        %s231 = sand.u32 %s111, 1
        %s232 = scalar_lea.sflag [#allocation4], %s231
        %s233 = sand.u32 %s111, 1
        %s234 = smul.addr %s233, 16
        %s235 = scalar_lea.vmem [#allocation7], %s234
        %s236 = sadd.s32 %s28, %s29
        %s237 = sadd.s32 %s28, %s29
        %v238 = vld [vmem:[%s209] sm:$0x3]
        %v239 = vld [vmem:[%s199] sm:$0x3]
        %s240 = scalar_lea.vmem %s199, 2 [#allocation2]
        %v241 = vld [vmem:[%s240] sm:$0x3]
        %v242 = vmax.f32 %v239, %v241
        %s243 = scalar_lea.vmem %s199, 4 [#allocation2]
        %v244 = vld [vmem:[%s243] sm:$0x3]
        %v245 = vmax.f32 %v242, %v244
        %vm246 = vcmp.eq.s32.totalorder %v238, 0
        %v247 = vsub.f32 %v239, %v245
        %v248 = vmul.f32 %v247, 1.442695
        %v249 = vpow.pop %v248
        %v250 = vsel %vm246, %v247, 0.0
        %v251 = vsel %vm246, %v249, 0.0
        %v252 = vsel %vm246, 0.005, 0.0
        %v253 = vsel %vm246, 1, 0
        %v254 = vcvt.s32.f32 %v253
        %vm255 = vcmask 1041408
        %v256 = vsel %vm255, %v254, 0.0
        %v257 = vrot.slane %v256, 4
        %v258 = vadd.f32 %v256, %v257
        %v259 = vrot.slane %v258, 2
        %v260 = vadd.f32 %v258, %v259
        %v261 = vrot.slane %v260, 1
        %v262 = vadd.f32 %v260, %v261
        %vm263 = vcmp.eq.s32.totalorder %v238, 1
        %v264 = vsub.f32 %v241, %v245
        %v265 = vmul.f32 %v264, 1.442695
        %v266 = vpow.pop %v265
        %v267 = vadd.f32 %v249, %v266
        %v268 = vsel %vm263, %v264, %v250
        %v269 = vsel %vm263, %v266, %v251
        %v270 = vsel %vm263, 25.0, %v252
        %v271 = vsel %vm263, 1, 0
        %v272 = vcvt.s32.f32 %v271
        %v273 = vsel %vm255, %v272, 0.0
        %v274 = vrot.slane %v273, 4
        %v275 = vadd.f32 %v273, %v274
        %v276 = vrot.slane %v275, 2
        %v277 = vadd.f32 %v275, %v276
        %v278 = vrot.slane %v277, 1
        %v279 = vadd.f32 %v277, %v278
        %vm280 = vcmp.eq.s32.totalorder %v238, 2
        %v281 = vsub.f32 %v244, %v245
        %v282 = vmul.f32 %v281, 1.442695
        %v283 = vpow.pop %v282
        %v284 = vadd.f32 %v267, %v283
        %v285 = vsel %vm280, %v281, %v268
        %v286 = vsel %vm280, %v283, %v269
        %v287 = vsel %vm280, 30.0, %v270
        %v288 = vsel %vm280, 1, 0
        %v289 = vcvt.s32.f32 %v288
        %v290 = vsel %vm255, %v289, 0.0
        %v291 = vrot.slane %v290, 4
        %v292 = vadd.f32 %v290, %v291
        %v293 = vrot.slane %v292, 2
        %v294 = vadd.f32 %v292, %v293
        %v295 = vrot.slane %v294, 1
        %v296 = vadd.f32 %v294, %v295
        %v297 = vrcp.pop %v284
        %v298 = vmul.f32 %v284, %v297
        %v299 = vsub.f32 2.0, %v298
        %v300 = vmul.f32 %v297, %v299
        %v301 = vlog2.pop %v284
        %v302 = vmul.f32 %v301, 0.6931472
        %v303 = vsub.f32 %v302, %v285
        %v304 = vmul.f32 %v286, %v300
        %v305 = vsub.f32 1.0, %v304
        %v306 = vmul.f32 %v305, %v305
        %v307 = vmul.f32 %v306, %v305
        %v308 = vmul.f32 %v287, %v307
        %v309 = vmul.f32 %v308, %v303
        %v310 = vsel %vm255, %v309, 0.0
        %v311 = vrot.slane %v310, 4
        %v312 = vadd.f32 %v310, %v311
        %v313 = vrot.slane %v312, 2
        %v314 = vadd.f32 %v312, %v313
        %v315 = vrot.slane %v314, 1
        %v316 = vadd.f32 %v314, %v315
        %v317 = vmul.f32 %v249, %v300
        %v318 = vsel %vm255, %v317, 0.0
        %v319 = vrot.slane %v318, 4
        %v320 = vadd.f32 %v318, %v319
        %v321 = vrot.slane %v320, 2
        %v322 = vadd.f32 %v320, %v321
        %v323 = vrot.slane %v322, 1
        %v324 = vadd.f32 %v322, %v323
        %v325 = vsel %vm246, %v317, 0.0
        %v326 = vsel %vm255, %v325, 0.0
        %v327 = vrot.slane %v326, 4
        %v328 = vadd.f32 %v326, %v327
        %v329 = vrot.slane %v328, 2
        %v330 = vadd.f32 %v328, %v329
        %v331 = vrot.slane %v330, 1
        %v332 = vadd.f32 %v330, %v331
        %v333 = vmul.f32 %v266, %v300
        %v334 = vsel %vm255, %v333, 0.0
        %v335 = vrot.slane %v334, 4
        %v336 = vadd.f32 %v334, %v335
        %v337 = vrot.slane %v336, 2
        %v338 = vadd.f32 %v336, %v337
        %v339 = vrot.slane %v338, 1
        %v340 = vadd.f32 %v338, %v339
        %v341 = vsel %vm263, %v333, 0.0
        %v342 = vsel %vm255, %v341, 0.0
        %v343 = vrot.slane %v342, 4
        %v344 = vadd.f32 %v342, %v343
        %v345 = vrot.slane %v344, 2
        %v346 = vadd.f32 %v344, %v345
        %v347 = vrot.slane %v346, 1
        %v348 = vadd.f32 %v346, %v347
        %v349 = vmul.f32 %v283, %v300
        %v350 = vsel %vm255, %v349, 0.0
        %v351 = vrot.slane %v350, 4
        %v352 = vadd.f32 %v350, %v351
        %v353 = vrot.slane %v352, 2
        %v354 = vadd.f32 %v352, %v353
        %v355 = vrot.slane %v354, 1
        %v356 = vadd.f32 %v354, %v355
        %v357 = vsel %vm280, %v349, 0.0
        %v358 = vsel %vm255, %v357, 0.0
        %v359 = vrot.slane %v358, 4
        %v360 = vadd.f32 %v358, %v359
        %v361 = vrot.slane %v360, 2
        %v362 = vadd.f32 %v360, %v361
        %v363 = vrot.slane %v362, 1
        %v364 = vadd.f32 %v362, %v363
        %vm365 = vcmask 1040384
        %v366 = vsel %vm365, %v316, %v332
        %v367 = vsel %vm255, %v366, %v348
        %vm368 = vcmask 1042432
        %v369 = vsel %vm368, %v367, %v364
        %vm370 = vcmask 1043456
        %v371 = vsel %vm370, %v369, %v324
        %vm372 = vcmask 1044480
        %v373 = vsel %vm372, %v371, %v340
        %vm374 = vcmask 1045504
        %v375 = vsel %vm374, %v373, %v356
        %vm376 = vcmask 1046528
        %v377 = vsel %vm376, %v375, %v262
        %v378 = vsel %vm365, %v279, %v296
        %v379 = vsel %vm255, %v378, 0.0
        %p380 = scmp.eq.s32.totalorder %s29, 0
        // Predicated region
        $region37: #{tpu_custom_call.1} parent=27 // pred_check
          %p381 = pneg %p380
        $region38: #{tpu_custom_call.1} parent=27 // pred_check_branch
          %383 = sbr.rel (%p381) target = $region40
        $region39: #{tpu_custom_call.1} parent=27 // pred_region
          %384 = vst [vmem:[%s235] sm:$0xff] %v377
          %385 = vst [vmem:[%s235 + $0x8] sm:$0xff] %v379
        $region40: #{tpu_custom_call.1} parent=27 // pred_fallthru
          _
        %p386 = scmp.gt.s32.totalorder %s29, 0
        // Predicated region
        $region41: #{tpu_custom_call.1} parent=27 // pred_check
          %p387 = pneg %p386
        $region42: #{tpu_custom_call.1} parent=27 // pred_check_branch
          %389 = sbr.rel (%p387) target = $region44
        $region43: #{tpu_custom_call.1} parent=27 // pred_region
          %v390 = vld [vmem:[%s235] sm:$0xff]
          %v391 = vld [vmem:[%s235 + $0x8] sm:$0xff]
          %v392 = vadd.f32 %v390, %v377
          %v393 = vadd.f32 %v391, %v379
          %394 = vst [vmem:[%s235] sm:$0xff] %v392
          %395 = vst [vmem:[%s235 + $0x8] sm:$0xff] %v393
        $region44: #{tpu_custom_call.1} parent=27 // pred_fallthru
          _
        %s396 = sand.u32 %s111, 1
        %s397 = scalar_lea.sflag [#allocation4], %s396
        %s398 = sand.u32 %s111, 1
        %s399 = smul.addr %s398, 16
        %s400 = scalar_lea.vmem [#allocation7], %s399
        // Predicated region
        $region45: #{tpu_custom_call.1} parent=27 // pred_check
          %p401 = pneg %p121
        $region46: #{tpu_custom_call.1} parent=27 // pred_check_branch
          %403 = sbr.rel (%p401) target = $region48
        $region47: #{tpu_custom_call.1} parent=27 // pred_region
          %405 = vsyncadd %s397, 0
          %s406 = smul.addr %s28, 2
          %s407 = smul.addr %s27, 2
          %s408 = sadd.s32 %s406, %s407
          %s409 = smul.addr %s408, 8
          %s410 = scalar_lea.hbm %s2, %s409
          %s411 = sshll.u32 %s400, 4
          %s412 = int_to_ptr.vmem [resolvable:$true] %s411
          %s413 = sshll.u32 %s410, 4
          %s414 = int_to_ptr.hbm [resolvable:$true] %s413
          %419 = dma.vmem_to_hbm [thread:$0]  %s412, 256, %s414, %s397, 128, 128, 8
        $region48: #{tpu_custom_call.1} parent=27 // pred_fallthru
          _
      $region28: #{tpu_custom_call.1} parent=5 // pred_fallthru
        _
      %p420 = scmp.le.s32.totalorder 2, %s17
      // Predicated region
      $region49: #{tpu_custom_call.1} parent=5 // pred_check
        %p421 = pneg %p420
      $region50: #{tpu_custom_call.1} parent=5 // pred_check_branch
        %423 = sbr.rel (%p421) target = $region52
      $region51: #{tpu_custom_call.1} parent=5 // pred_region
        %s424 = ssub.s32 %s17, 2
        // Predicated region
        $region53: #{tpu_custom_call.1} parent=51 // pred_check
          %p425 = pneg %p127
        $region54: #{tpu_custom_call.1} parent=51 // pred_check_branch
          %427 = sbr.rel (%p425) target = $region56
        $region55: #{tpu_custom_call.1} parent=51 // pred_region
          %s428 = sand.u32 %s112, 1
          %s429 = scalar_lea.sflag [#allocation4], %s428
          %s430 = sand.u32 %s112, 1
          %s431 = smul.addr %s430, 16
          %s432 = scalar_lea.vmem [#allocation7], %s431
          %434 = dma.done %s429, 256
        $region56: #{tpu_custom_call.1} parent=51 // pred_fallthru
          _
      $region52: #{tpu_custom_call.1} parent=5 // pred_fallthru
        _
    $region6: #{tpu_custom_call.1} parent=1 // loop_footer
      %s21 = sadd.s32 1, %s17
    $region7: #{tpu_custom_call.1} parent=1 // loop_footer_branch
      %16 = sbr.rel target = $region3
    $region8: #{tpu_custom_call.1} parent=1 // loop_exit
      _
    %435 = vsyncpa [#allocation3], 1
    %s436 = scalar_lea.sflag [#allocation3], 1
    %437 = vsyncpa %s436, 1
    %438 = vsyncpa [#allocation6], 1
    %s439 = scalar_lea.sflag [#allocation6], 1
    %440 = vsyncpa %s439, 1
    %441 = vsyncpa [#allocation4], 1
    %s442 = scalar_lea.sflag [#allocation4], 1
    %443 = vsyncpa %s442, 1

</llo_original>
